<compile_context>
chip_gen: v5e
topology: v5e:2x2
jax: 0.10.0
libtpu: 0.0.40
codegen_flags: <defaults>
</compile_context>

<pallas_src>
import functools
import math

import jax
import jax.numpy as jnp
from jax.experimental import pallas as pl
from jax.experimental.pallas import tpu as pltpu


# --------------------------------------------------------------------------- #
# Kernels
# --------------------------------------------------------------------------- #
def _norm_kernel(x_ref, o_ref, *, eps, const):
    # x_ref / o_ref: (rows, D) tile, one instance per row (full D extent).
    xf = x_ref[...].astype(jnp.float32)
    sumsq = jnp.sum(xf * xf, axis=-1, keepdims=True) + jnp.float32(eps)   # (rows, 1)
    factor = jnp.float32(const) * jax.lax.rsqrt(sumsq)                    # (rows, 1)
    o_ref[...] = (xf * factor).astype(o_ref.dtype)


def _sumsq_kernel(x_ref, o_ref, *, d, d_block):
    # Pass 1 of the large-D fallback: accumulate per-row sum of squares over the
    # trailing "arbitrary" D-block axis.  o_ref block index is constant along k,
    # so it stays VMEM-resident as an accumulator.
    k = pl.program_id(1)
    xf = x_ref[...].astype(jnp.float32)
    if d % d_block != 0:  # static: mask the ragged trailing D block
        col = k * d_block + jax.lax.broadcasted_iota(jnp.int32, xf.shape, 1)
        xf = jnp.where(col < d, xf, jnp.float32(0.0))

    @pl.when(k == 0)
    def _():
        o_ref[...] = jnp.zeros_like(o_ref)

    o_ref[...] += jnp.sum(xf * xf, axis=-1, keepdims=True)


def _scale_kernel(x_ref, sumsq_ref, o_ref, *, eps, const):
    # Pass 2 of the large-D fallback: rescale each D block.
    factor = jnp.float32(const) * jax.lax.rsqrt(sumsq_ref[...] + jnp.float32(eps))
    o_ref[...] = (x_ref[...].astype(jnp.float32) * factor).astype(o_ref.dtype)


# --------------------------------------------------------------------------- #
# Sizing heuristics
# --------------------------------------------------------------------------- #
def _vmem_budgets():
    """Per-generation VMEM sizing (v5e/v6e: 128 MiB, v7x: 64 MiB per core)."""
    phys = 64 << 20  # conservative default (v7x per-core VMEM)
    try:
        cap = getattr(pltpu.get_tpu_info(), "vmem_capacity_bytes", None)
        if cap:
            phys = int(cap)
    except Exception:
        pass
    phys = max(16 << 20, min(phys, 128 << 20))
    vmem_limit = (phys * 3) // 4       # ~96 MiB on v5e/v6e, ~48 MiB on v7x
    block_budget = vmem_limit // 6     # 2x in + 2x out double buffers + f32 temps
    return vmem_limit, block_budget


def _choose_rows(n, row_bytes, block_budget, *, min_block_bytes=1 << 20,
                 target_steps=4):
    """Rows per block: multiple of 8 (or full N when N < 8), fits the VMEM block
    budget, and prefers >= target_steps grid steps (down to ~1 MiB blocks) so the
    software pipeline and megacore both get work."""
    if n <= 8:
        return n
    rows = max(8, min(n, block_budget // max(row_bytes, 1)) // 8 * 8)
    while (rows > 8
           and pl.cdiv(n, rows) < target_steps
           and (rows - 8) * row_bytes >= min_block_bytes):
        rows -= 8
    return rows


# --------------------------------------------------------------------------- #
# Wrapper
# --------------------------------------------------------------------------- #
def instance_l2norm(x, *, size_average=True, eps=1e-5, scale=1.0,
                    donate_input=False, d_block=None):
    """x: (N, C, H, W) array (NCHW, matching the PyTorch module).

    donate_input: pass input_output_aliases={0: 0} (only if the caller can
                  donate x).
    d_block:      override for the D tile of the two-pass fallback (testing).
    """
    n, c, h, w = x.shape
    d = c * h * w
    const = float(scale) * (math.sqrt(float(d)) if size_average else 1.0)

    x2 = x.reshape(n, d)                       # free reshape, no HBM pass
    itemsize = x2.dtype.itemsize
    row_bytes = d * itemsize
    vmem_limit, block_budget = _vmem_budgets()
    aliases = {0: 0} if donate_input else {}

    single_pass = (d_block is None) and (min(n, 8) * row_bytes <= block_budget)

    if single_pass:
        rows = _choose_rows(n, row_bytes, block_budget)
        # TODO(synk): when the grid degenerates to a single step (N <= rows) and
        # D is large, split D with a two-phase reduce-then-scale schedule inside
        # one pallas_call so both v7x TensorCores and the DMA pipeline get work.
        out = pl.pallas_call(
            functools.partial(_norm_kernel, eps=eps, const=const),
            out_shape=jax.ShapeDtypeStruct((n, d), x2.dtype),
            grid_spec=pltpu.PrefetchScalarGridSpec(
                num_scalar_prefetch=0,
                grid=(pl.cdiv(n, rows),),
                in_specs=[pl.BlockSpec((rows, d), lambda i: (i, 0))],
                out_specs=pl.BlockSpec((rows, d), lambda i: (i, 0)),
            ),
            compiler_params=pltpu.CompilerParams(
                dimension_semantics=("parallel",),
                vmem_limit_bytes=vmem_limit,
            ),
            cost_estimate=pl.CostEstimate(
                flops=int(3 * n * d),
                transcendentals=int(n),
                bytes_accessed=int(2 * n * d * itemsize)),
            input_output_aliases=aliases,
        )(x2)
        return out.reshape(n, c, h, w)

    # ---- two-pass fallback: D too large for a VMEM-resident row block ------ #
    rows = min(n, 8)
    if d_block is None:
        d_block = max(128, (block_budget // (rows * itemsize)) // 128 * 128)
    if d_block >= d:
        d_block = d
    nb = pl.cdiv(n, rows)
    nd = pl.cdiv(d, d_block)

    sumsq = pl.pallas_call(
        functools.partial(_sumsq_kernel, d=d, d_block=d_block),
        out_shape=jax.ShapeDtypeStruct((n, 1), jnp.float32),
        grid_spec=pltpu.PrefetchScalarGridSpec(
            num_scalar_prefetch=0,
            grid=(nb, nd),
            in_specs=[pl.BlockSpec((rows, d_block), lambda i, k: (i, k))],
            out_specs=pl.BlockSpec((rows, 1), lambda i, k: (i, 0)),
        ),
        compiler_params=pltpu.CompilerParams(
            dimension_semantics=("parallel", "arbitrary"),
            vmem_limit_bytes=vmem_limit,
        ),
        cost_estimate=pl.CostEstimate(
            flops=int(2 * n * d),
            transcendentals=0,
            bytes_accessed=int(n * d * itemsize + n * 4)),
    )(x2)

    out = pl.pallas_call(
        functools.partial(_scale_kernel, eps=eps, const=const),
        out_shape=jax.ShapeDtypeStruct((n, d), x2.dtype),
        grid_spec=pltpu.PrefetchScalarGridSpec(
            num_scalar_prefetch=0,
            grid=(nb, nd),
            in_specs=[pl.BlockSpec((rows, d_block), lambda i, k: (i, k)),
                      pl.BlockSpec((rows, 1), lambda i, k: (i, 0))],
            out_specs=pl.BlockSpec((rows, d_block), lambda i, k: (i, k)),
        ),
        compiler_params=pltpu.CompilerParams(
            dimension_semantics=("parallel", "parallel"),
            vmem_limit_bytes=vmem_limit,
        ),
        cost_estimate=pl.CostEstimate(
            flops=int(n * d),
            transcendentals=int(n),
            bytes_accessed=int(2 * n * d * itemsize + n * 4)),
        input_output_aliases=aliases,
    )(x2, sumsq)
    return out.reshape(n, c, h, w)
    # TODO(synk): bf16 on v6e/v7x could square adjacent bf16 pairs natively and
    # convert partial sums to f32 less often if the VALU slot ever saturates
    # (profile first; HBM-bound at these shapes).


# --------------------------------------------------------------------------- #
# Reference + self-test
# --------------------------------------------------------------------------- #
def _reference(x, *, size_average=True, eps=1e-5, scale=1.0):
    n, c, h, w = x.shape
    xf = x.astype(jnp.float32)
    sumsq = jnp.sum((xf * xf).reshape(n, 1, 1, -1), axis=3, keepdims=True)
    if size_average:
        out = xf * (scale * jnp.sqrt((c * h * w) / (sumsq + eps)))
    else:
        out = xf * (scale / jnp.sqrt(sumsq + eps))
    return out.astype(x.dtype)


if __name__ == "__main__":
    key = jax.random.PRNGKey(0)
    k1, k2, k3 = jax.random.split(key, 3)

    # Main shape implied by the module's NCHW forward.
    x = jax.random.normal(k1, (2, 4, 16, 16), dtype=jnp.float32)
    out = jax.block_until_ready(instance_l2norm(x, size_average=True, eps=1e-5, scale=1.0))
    ref = _reference(x)
    assert out.shape == x.shape and out.dtype == x.dtype
    assert float(jnp.max(jnp.abs(out - ref))) < 1e-4

    # size_average=False branch.
    out2 = jax.block_until_ready(instance_l2norm(x, size_average=False))
    assert float(jnp.max(jnp.abs(out2 - _reference(x, size_average=False)))) < 1e-4

    # Misaligned N and D: no padding / slicing, edge-block masking only.
    xm = jax.random.normal(k2, (11, 3, 5, 7), dtype=jnp.float32)
    outm = jax.block_until_ready(instance_l2norm(xm, scale=0.5))
    assert float(jnp.max(jnp.abs(outm - _reference(xm, scale=0.5)))) < 1e-4

    # Force the two-pass (large-D) fallback: aligned D and ragged trailing D block.
    outf = jax.block_until_ready(instance_l2norm(x, d_block=256))
    assert float(jnp.max(jnp.abs(outf - ref))) < 1e-4
    xl = jax.random.normal(k3, (3, 8, 10, 10), dtype=jnp.float32)   # D=800, 800%256!=0
    outl = jax.block_until_ready(instance_l2norm(xl, d_block=256))
    assert float(jnp.max(jnp.abs(outl - _reference(xl)))) < 1e-4

    # bf16 path (scale applied in f32, single cast on store).
    xb = x.astype(jnp.bfloat16)
    outb = jax.block_until_ready(instance_l2norm(xb))
    assert outb.dtype == jnp.bfloat16
    diff_b = jnp.max(jnp.abs(outb.astype(jnp.float32)
                             - _reference(xb).astype(jnp.float32)))
    assert float(diff_b) < 5e-2

    print("KERNEL_OK")
</pallas_src>

<mosaic_0001>
module attributes {stable_mosaic.version = 11 : i64} {
  func.func @_norm_kernel(%arg0: i32, %arg1: memref<2x1024xf32, #tpu.memory_space<vmem>>, %arg2: memref<2x1024xf32, #tpu.memory_space<vmem>>) attributes {dimension_semantics = [#tpu.dimension_semantics<parallel>], iteration_bounds = array<i64: 1>, scalar_prefetch = 0 : i64, scratch_operands = 0 : i64, tpu.core_type = #tpu.core_type<tc>, window_params = [{transform_indices = @transform_0, window_bounds = array<i64: 2, 1024>}, {transform_indices = @transform_1, window_bounds = array<i64: 2, 1024>}]} {
    %c0 = arith.constant 0 : index
    %c0_0 = arith.constant 0 : index
    %0 = vector.load %arg1[%c0, %c0_0] : memref<2x1024xf32, #tpu.memory_space<vmem>>, vector<2x1024xf32>
    %1 = arith.mulf %0, %0 : vector<2x1024xf32>
    %cst = arith.constant dense<0.000000e+00> : vector<2xf32>
    %2 = vector.multi_reduction <add>, %1, %cst [1] : vector<2x1024xf32> to vector<2xf32>
    %3 = vector.shape_cast %2 : vector<2xf32> to vector<2x1xf32>
    %cst_1 = arith.constant 9.99999974E-6 : f32
    %4 = vector.broadcast %cst_1 : f32 to vector<2x1xf32>
    %5 = arith.addf %3, %4 : vector<2x1xf32>
    %6 = math.rsqrt %5 : vector<2x1xf32>
    %cst_2 = arith.constant 3.200000e+01 : f32
    %7 = vector.broadcast %cst_2 : f32 to vector<2x1xf32>
    %8 = arith.mulf %7, %6 : vector<2x1xf32>
    %9 = vector.broadcast %8 : vector<2x1xf32> to vector<2x1024xf32>
    %10 = arith.mulf %0, %9 : vector<2x1024xf32>
    %c0_3 = arith.constant 0 : index
    %c0_4 = arith.constant 0 : index
    %11 = vector.load %arg2[%c0_3, %c0_4] : memref<2x1024xf32, #tpu.memory_space<vmem>>, vector<2x1024xf32>
    tpu.vector_store %arg2[%c0_3, %c0_4], %10 {strides = array<i32>} : memref<2x1024xf32, #tpu.memory_space<vmem>>, vector<2x1024xf32>,
    return
  }
  func.func @transform_0(%arg0: i32) -> (i32, i32) {
    %c0_i32 = arith.constant 0 : i32
    %c0_i32_0 = arith.constant 0 : i32
    return %arg0, %c0_i32 : i32, i32
  }
  func.func @transform_1(%arg0: i32) -> (i32, i32) {
    %c0_i32 = arith.constant 0 : i32
    %c0_i32_0 = arith.constant 0 : i32
    return %arg0, %c0_i32 : i32, i32
  }
}

</mosaic_0001>

<llo_original>
// kernel: tpu_custom_call.1
$region0: #{tpu_custom_call.1}
  #allocation0 [shape = 'u32[]', space=smem, size = 0x4, offset = 0x4, fixed_abs, tag = 'smem constant byte address 0x4 - core index']
  #allocation1 [shape = 'u32[72,128]{1,0:T(1,128)}', space=vmem, size = 0x9000, scoped, tag = 'internal scratch']
  %s0 = inlined_call_operand.hbm [shape: f32[2,1024], index: 0, kind: input, shape index: {}]
  %s1 = inlined_call_operand.hbm [shape: f32[2,1024], index: 1, kind: output, shape index: {}]
  %s2 = sld [smem:[#allocation0]]
  $region18: #{tpu_custom_call.1} parent=0
    _
  %s4 = ssub.s32 1, %s2
  %s5 = scalar_select 0, %s4, %s2
  $region1: #{tpu_custom_call.1} parent=0
    #allocation2 [shape = 'u8[8192]{0}', space=vmem, size = 0x2000, scoped, tag = 'input window, operand 0, single buffered']
    #allocation3 [shape = 's32[1]{0}', space=sflag, size = 0x4, scoped, tag = 'scoped memory for tpu_custom_call.1']
    #allocation4 [shape = 's32[1]{0}', space=sflag, size = 0x4, scoped, tag = 'scoped memory for tpu_custom_call.1']
    #allocation5 [shape = 'u8[8192]{0}', space=vmem, size = 0x2000, scoped, tag = 'output window, operand 0, single buffered']
    %6 = vsyncpa [#allocation3], 0
    %7 = vsyncpa [#allocation4], 0
    // Predicated region
    $region2: #{tpu_custom_call.1} parent=1 // pred_check
      _
    $region3: #{tpu_custom_call.1} parent=1 // pred_check_branch
      %9 = sbr.rel (0) target = $region5
    $region4: #{tpu_custom_call.1} parent=1 // pred_region
      %11 = vsyncadd [#allocation3], 0
      %s13 = sshll.u32 %s0, 4
      %s14 = int_to_ptr.hbm [resolvable:$true] %s13
      %s15 = sshll.u32 [#allocation2], 4
      %s16 = int_to_ptr.vmem [resolvable:$true] %s15
      %18 = dma.hbm_to_vmem [thread:$0]  %s14, 256, %s16, [#allocation3]
    $region5: #{tpu_custom_call.1} parent=1 // pred_fallthru
      _
    // Predicated region
    $region6: #{tpu_custom_call.1} parent=1 // pred_check
      _
    $region7: #{tpu_custom_call.1} parent=1 // pred_check_branch
      %20 = sbr.rel (0) target = $region9
    $region8: #{tpu_custom_call.1} parent=1 // pred_region
      %22 = dma.done [#allocation3], 256
    $region9: #{tpu_custom_call.1} parent=1 // pred_fallthru
      _
    %v23 = vld [vmem:[#allocation2] sm:$0xff]
    %v24 = vld [vmem:[#allocation2 + $0x8] sm:$0xff]
    %v25 = vmul.f32 %v23, %v23
    %v26 = vmul.f32 %v24, %v24
    %29 = vst [vmem:[#allocation1] ss:$4 sm:$0xff] %v25
    %s30 = scalar_lea.vmem [#allocation1], 32
    %31 = vst [vmem:[%s30] ss:$4 sm:$0xff] %v26
    %v32 = vld.sshfl [vmem:[#allocation1] sm:$0xff pattern:$0x73625140]
    %v33 = vld.sshfl [vmem:[#allocation1 + $0x8] sm:$0xff pattern:$0x73625140]
    %v34 = vld.sshfl [vmem:[#allocation1 + $0x10] sm:$0xff pattern:$0x73625140]
    %v35 = vld.sshfl [vmem:[#allocation1 + $0x18] sm:$0xff pattern:$0x73625140]
    %v36 = vld.sshfl [vmem:[#allocation1 + $0x20] sm:$0xff pattern:$0x73625140]
    %v37 = vld.sshfl [vmem:[#allocation1 + $0x28] sm:$0xff pattern:$0x73625140]
    %v38 = vld.sshfl [vmem:[#allocation1 + $0x30] sm:$0xff pattern:$0x73625140]
    %v39 = vld.sshfl [vmem:[#allocation1 + $0x38] sm:$0xff pattern:$0x73625140]
    %vm48 = vcmask 1041408
    %v49 = vsel %vm48, %v32, 0.0
    %v50 = vsel %vm48, %v33, 0.0
    %v51 = vadd.f32 %v49, %v50
    %v52 = vsel %vm48, %v34, 0.0
    %v53 = vadd.f32 %v51, %v52
    %v54 = vsel %vm48, %v35, 0.0
    %v55 = vadd.f32 %v53, %v54
    %v56 = vsel %vm48, %v36, 0.0
    %v57 = vadd.f32 %v55, %v56
    %v58 = vsel %vm48, %v37, 0.0
    %v59 = vadd.f32 %v57, %v58
    %v60 = vsel %vm48, %v38, 0.0
    %v61 = vadd.f32 %v59, %v60
    %v62 = vsel %vm48, %v39, 0.0
    %v63 = vadd.f32 %v61, %v62
    %64 = vadd.xlane.f32.xlu0 %v63
    %v65 = vpop.xlane.xlu0 %64
    %v66 = vadd.f32 %v65, 1e-05
    %v67 = vrsqrt.pop %v66
    %v68 = vmul.f32 %v67, %v66
    %v69 = vmul.f32 %v68, %v67
    %v70 = vmul.f32 0.5, %v69
    %v71 = vsub.f32 1.5, %v70
    %v72 = vmul.f32 %v67, %v71
    %vm73 = vweird.f32 %v66
    %vm74 = vweird.f32 %v67
    %vm75 = vmor %vm73, %vm74
    %v76 = vsel %vm75, %v67, %v72
    %v77 = vmul.f32 %v76, 32.0
    %v80 = vunpack.c.l.s4 269488144
    %v81 = vunpack.c.0.s8 %v80
    %v82 = vperm.slane %v77, %v81
    %v84 = vmul.f32 %v23, %v82
    %v85 = vmul.f32 %v24, %v82
    %86 = vst [vmem:[#allocation5] sm:$0xff] %v84
    %87 = vst [vmem:[#allocation5 + $0x8] sm:$0xff] %v85
    // Predicated region
    $region10: #{tpu_custom_call.1} parent=1 // pred_check
      _
    $region11: #{tpu_custom_call.1} parent=1 // pred_check_branch
      %89 = sbr.rel (0) target = $region13
    $region12: #{tpu_custom_call.1} parent=1 // pred_region
      %91 = vsyncadd [#allocation4], 0
      %s93 = sshll.u32 [#allocation5], 4
      %s94 = int_to_ptr.vmem [resolvable:$true] %s93
      %s95 = sshll.u32 %s1, 4
      %s96 = int_to_ptr.hbm [resolvable:$true] %s95
      %98 = dma.vmem_to_hbm [thread:$0]  %s94, 256, %s96, [#allocation4]
    $region13: #{tpu_custom_call.1} parent=1 // pred_fallthru
      _
    // Predicated region
    $region14: #{tpu_custom_call.1} parent=1 // pred_check
      _
    $region15: #{tpu_custom_call.1} parent=1 // pred_check_branch
      %100 = sbr.rel (0) target = $region17
    $region16: #{tpu_custom_call.1} parent=1 // pred_region
      %102 = dma.done [#allocation4], 256
    $region17: #{tpu_custom_call.1} parent=1 // pred_fallthru
      _
    %103 = vsyncpa [#allocation3], 1
    %104 = vsyncpa [#allocation4], 1

</llo_original>
